<compile_context>
chip_gen: v7x
topology: tpu7x:2x2x1
jax: 0.10.0
libtpu: 0.0.40
codegen_flags: <defaults>
</compile_context>

<pallas_src>
import functools

import jax
import jax.numpy as jnp
from jax import lax
from jax.experimental import pallas as pl
from jax.experimental.pallas import tpu as pltpu


# ----------------------------------------------------------------------------
# Per-chip-generation tuning (v5e / v6e / v7x)
# ----------------------------------------------------------------------------
def _tpu_generation():
    try:
        kind = jax.devices()[0].device_kind.lower()
    except Exception:
        kind = ""
    if "v7" in kind or "7x" in kind:
        return 7
    if "v6" in kind:
        return 6
    if "v5" in kind:
        return 5
    return 0


_GEN = _tpu_generation()
# v5e/v6e: 128 MiB physical VMEM -> raise the scoped limit well past the 16/32
# MiB defaults.  v7x (and unknown chips): stay at 32 MiB (v7x is 64 MiB phys).
VMEM_LIMIT_BYTES = (96 * 1024 * 1024) if _GEN in (5, 6) else (32 * 1024 * 1024)
# bf16 exp only where the EUP has a bf16 path (v6e/v7x); v5e keeps f32.
EXP_BF16 = _GEN in (6, 7)
# v7x has 2 TensorCores per chip sharded over "parallel" grid axes.
MIN_PARALLEL_BLOCKS = 2 if _GEN == 7 else 1
# Tile targets: bigger on the 128-MiB-VMEM chips, bounded on v7x so the
# (tq, tkv) f32 score/prob intermediates stay well inside the scoped budget.
TQ_TARGET = 256 if _GEN == 7 else 512
TKV_TARGET = 1024 if _GEN == 7 else 2048
TL_TARGET = 1024 if _GEN == 7 else 2048


def _pick_tile(dim, target, min_blocks=1):
    """Largest multiple-of-8 tile <= min(target, dim) giving >= min_blocks blocks."""
    if dim <= 8:
        return dim
    t = max(8, (min(target, dim) // 8) * 8)
    if min_blocks > 1 and dim >= 16:
        t = min(t, max(8, ((dim // min_blocks) // 8) * 8))
    return t


# ----------------------------------------------------------------------------
# Fused conv stem (3x3 / stride-2, via space-to-depth taps) + ReLU + 1x1 neck
# ----------------------------------------------------------------------------
def _stem_neck_kernel(xs_ref, w1_ref, b1_ref, w2_ref, b2_ref, o_ref, *,
                      n_rows, wo):
    # xs_ref : (1, Ho+1, Wo+1, 4C) bf16  space-to-depth(2) padded image
    # w1_ref : (4, 4C, C1) bf16          2x2 tap weights of the 3x3/s2 conv
    # o_ref  : (1, Ho, Wo, D)            neck features (channels-last)
    c1 = w1_ref.shape[-1]
    taps = ((0, 0), (0, 1), (1, 0), (1, 1))

    def row_body(r, carry):
        acc = jnp.zeros((wo, c1), jnp.float32)
        for t, (dh, dw) in enumerate(taps):
            patch = xs_ref[0, r + dh, pl.ds(dw, wo), :]          # (Wo, 4C)
            acc = acc + jnp.dot(patch, w1_ref[t],
                                preferred_element_type=jnp.float32)
        h = jnp.maximum(acc + b1_ref[...], 0.0)                  # conv bias+ReLU
        f = jnp.dot(h.astype(w2_ref.dtype), w2_ref[...],
                    preferred_element_type=jnp.float32) + b2_ref[...]
        o_ref[0, r] = f.astype(o_ref.dtype)
        return carry

    lax.fori_loop(0, n_rows, row_body, 0)


def conv_stem_neck(xs2d, w_taps, b1, w2, b2, *, ho, wo,
                   out_dtype=jnp.bfloat16):
    """Fused backbone stem + neck.  xs2d:(BN, Ho+1, Wo+1, 4C) bf16."""
    BN, Hs, Ws, C4 = xs2d.shape
    assert Hs == ho + 1 and Ws == wo + 1
    C1 = w_taps.shape[-1]
    D = w2.shape[-1]
    grid = (BN,)
    kernel = functools.partial(_stem_neck_kernel, n_rows=ho, wo=wo)
    return pl.pallas_call(
        kernel,
        out_shape=jax.ShapeDtypeStruct((BN, ho, wo, D), out_dtype),
        grid=grid,
        in_specs=[
            pl.BlockSpec((1, Hs, Ws, C4), lambda n: (n, 0, 0, 0)),
            pl.BlockSpec((4, C4, C1), lambda n: (0, 0, 0)),
            pl.BlockSpec((1, C1), lambda n: (0, 0)),
            pl.BlockSpec((C1, D), lambda n: (0, 0)),
            pl.BlockSpec((1, D), lambda n: (0, 0)),
        ],
        out_specs=pl.BlockSpec((1, ho, wo, D), lambda n: (n, 0, 0, 0)),
        compiler_params=pltpu.CompilerParams(
            dimension_semantics=("parallel",),
            vmem_limit_bytes=VMEM_LIMIT_BYTES),
        cost_estimate=pl.CostEstimate(
            flops=2 * BN * ho * wo * (4 * C4 * C1 + C1 * D),
            transcendentals=0,
            bytes_accessed=2 * (BN * Hs * Ws * C4 + 4 * C4 * C1 + C1 * D
                                + BN * ho * wo * D)),
    )(xs2d, w_taps, b1.reshape(1, C1).astype(jnp.float32),
      w2, b2.reshape(1, D).astype(jnp.float32))


# ----------------------------------------------------------------------------
# Fused K||V projection with two directly-shaped outputs (no slices/transpose)
# ----------------------------------------------------------------------------
def _kv_proj_kernel(x_ref, w_ref, b_ref, k_ref, v_ref):
    d = k_ref.shape[-1]
    acc = jnp.dot(x_ref[0], w_ref[...],
                  preferred_element_type=jnp.float32) + b_ref[...]
    k_ref[0] = acc[:, :d].astype(k_ref.dtype)     # 128-aligned lane slices
    v_ref[0] = acc[:, d:].astype(v_ref.dtype)


def kv_projection(feat, w_kv, b_kv, *, out_dtype=jnp.bfloat16):
    """feat:(B,Lkv,D) bf16 -> K:(B,Lkv,D), V:(B,Lkv,D) in one pass."""
    B, Lkv, D = feat.shape
    assert w_kv.shape == (D, 2 * D)
    tl = _pick_tile(Lkv, TL_TARGET, MIN_PARALLEL_BLOCKS if B == 1 else 1)
    grid = (B, pl.cdiv(Lkv, tl))
    out = jax.ShapeDtypeStruct((B, Lkv, D), out_dtype)
    return pl.pallas_call(
        _kv_proj_kernel,
        out_shape=(out, out),
        grid=grid,
        in_specs=[
            pl.BlockSpec((1, tl, D), lambda b, l: (b, l, 0)),
            pl.BlockSpec((D, 2 * D), lambda b, l: (0, 0)),
            pl.BlockSpec((1, 2 * D), lambda b, l: (0, 0)),
        ],
        out_specs=(pl.BlockSpec((1, tl, D), lambda b, l: (b, l, 0)),
                   pl.BlockSpec((1, tl, D), lambda b, l: (b, l, 0))),
        compiler_params=pltpu.CompilerParams(
            dimension_semantics=("parallel", "parallel"),
            vmem_limit_bytes=VMEM_LIMIT_BYTES),
        cost_estimate=pl.CostEstimate(
            flops=4 * B * Lkv * D * D,
            transcendentals=0,
            bytes_accessed=2 * B * Lkv * D + 4 * D * D + 8 * D
            + 4 * B * Lkv * D),
    )(feat, w_kv, b_kv.reshape(1, 2 * D).astype(jnp.float32))


# ----------------------------------------------------------------------------
# Flash cross-attention with fused Q projection + output projection + residual
# ----------------------------------------------------------------------------
def _flash_xattn_kernel(bevq_ref, wq_ref, bq_ref, k_ref, v_ref, wo_ref, bo_ref,
                        o_ref, q_sc, m_sc, l_sc, acc_sc, *,
                        scale, lkv_valid, tkv, need_mask, exp_bf16):
    kv = pl.program_id(2)

    @pl.when(kv == 0)
    def _():
        # fused Q projection (+ 1/sqrt(D) scale folded into q); W_q is VMEM
        # resident so this rides in the first kv step of every (b, q-tile).
        qp = jnp.dot(bevq_ref[...].astype(jnp.bfloat16), wq_ref[...],
                     preferred_element_type=jnp.float32) + bq_ref[...]
        q_sc[...] = (qp * scale).astype(q_sc.dtype)
        m_sc[...] = jnp.full_like(m_sc, -1e30)      # finite init: no -inf NaNs
        l_sc[...] = jnp.zeros_like(l_sc)
        acc_sc[...] = jnp.zeros_like(acc_sc)

    # scores: contract the shared D axis of q:(tq,D) and k:(tkv,D); the MXU
    # consumes K with an implicit trans_b -> no HBM-side K transpose.
    s = lax.dot_general(q_sc[...], k_ref[0],
                        dimension_numbers=(((1,), (1,)), ((), ())),
                        preferred_element_type=jnp.float32)
    if need_mask:                                   # zero-padded KV columns
        col = lax.broadcasted_iota(jnp.int32, s.shape, 1) + kv * tkv
        s = jnp.where(col < lkv_valid, s, -1e30)

    m_prev = m_sc[...]
    m_new = jnp.maximum(m_prev, jnp.max(s, axis=-1, keepdims=True))
    alpha = jnp.exp(m_prev - m_new)
    if exp_bf16:
        # v6e/v7x: bf16 EUP exp (~2x transcendental throughput); the exp is the
        # saturating slot at D=128.  m/l bookkeeping stays f32.
        p = jnp.exp((s - m_new).astype(jnp.bfloat16))
        l_sc[...] = alpha * l_sc[...] + jnp.sum(p.astype(jnp.float32),
                                                axis=-1, keepdims=True)
        pv = jnp.dot(p, v_ref[0], preferred_element_type=jnp.float32)
    else:
        # v5e: no bf16 VPU/EUP -> keep the exp in f32.
        p = jnp.exp(s - m_new)
        l_sc[...] = alpha * l_sc[...] + jnp.sum(p, axis=-1, keepdims=True)
        pv = jnp.dot(p.astype(v_ref.dtype), v_ref[0],
                     preferred_element_type=jnp.float32)
    acc_sc[...] = alpha * acc_sc[...] + pv
    m_sc[...] = m_new

    @pl.when(kv == pl.num_programs(2) - 1)
    def _():
        # approx reciprocal (EUP) -> small relative error vs exact divide;
        # acceptable for inference.
        attn = acc_sc[...] * pl.reciprocal(l_sc[...], approx=True)
        proj = jnp.dot(attn.astype(wo_ref.dtype), wo_ref[...],
                       preferred_element_type=jnp.float32) + bo_ref[...]
        o_ref[0] = (proj + bevq_ref[...]).astype(o_ref.dtype)    # + residual


def flash_cross_attention(bev_q, w_q, b_q, k, v, w_o, b_o, *,
                          out_dtype=jnp.float32):
    """bev_q:(Lq,D) f32 (proj input + residual), k/v:(B,Lkv,D) bf16."""
    Lq, D = bev_q.shape
    B, Lkv, D2 = k.shape
    assert D == D2 and v.shape == (B, Lkv, D)
    scale = 1.0 / (D ** 0.5)

    tq = _pick_tile(Lq, TQ_TARGET, MIN_PARALLEL_BLOCKS if B == 1 else 1)
    tkv = _pick_tile(Lkv, TKV_TARGET, 1)
    lkv_pad = pl.cdiv(Lkv, tkv) * tkv
    need_mask = lkv_pad != Lkv
    if need_mask:            # zero-pad K/V so every kv tile is fully resident
        k = jnp.pad(k, ((0, 0), (0, lkv_pad - Lkv), (0, 0)))
        v = jnp.pad(v, ((0, 0), (0, lkv_pad - Lkv), (0, 0)))

    grid = (B, pl.cdiv(Lq, tq), lkv_pad // tkv)
    kernel = functools.partial(_flash_xattn_kernel, scale=scale,
                               lkv_valid=Lkv, tkv=tkv, need_mask=need_mask,
                               exp_bf16=EXP_BF16)
    return pl.pallas_call(
        kernel,
        out_shape=jax.ShapeDtypeStruct((B, Lq, D), out_dtype),
        grid=grid,
        in_specs=[
            pl.BlockSpec((tq, D), lambda b, qi, kv: (qi, 0)),         # bev Q / residual
            pl.BlockSpec((D, D), lambda b, qi, kv: (0, 0)),           # W_q
            pl.BlockSpec((1, D), lambda b, qi, kv: (0, 0)),           # b_q
            pl.BlockSpec((1, tkv, D), lambda b, qi, kv: (b, kv, 0)),  # K
            pl.BlockSpec((1, tkv, D), lambda b, qi, kv: (b, kv, 0)),  # V
            pl.BlockSpec((D, D), lambda b, qi, kv: (0, 0)),           # W_o
            pl.BlockSpec((1, D), lambda b, qi, kv: (0, 0)),           # b_o
        ],
        out_specs=pl.BlockSpec((1, tq, D), lambda b, qi, kv: (b, qi, 0)),
        scratch_shapes=[
            pltpu.VMEM((tq, D), jnp.bfloat16),   # projected + scaled Q
            pltpu.VMEM((tq, 1), jnp.float32),    # running max
            pltpu.VMEM((tq, 1), jnp.float32),    # running denom
            pltpu.VMEM((tq, D), jnp.float32),    # running numerator
        ],
        compiler_params=pltpu.CompilerParams(
            dimension_semantics=("parallel", "parallel", "arbitrary"),
            vmem_limit_bytes=VMEM_LIMIT_BYTES),
        cost_estimate=pl.CostEstimate(
            flops=4 * B * Lq * lkv_pad * D + 4 * B * Lq * D * D,
            transcendentals=B * Lq * lkv_pad,
            bytes_accessed=4 * Lq * D + 4 * D * D + 8 * D
            + 4 * B * lkv_pad * D + 4 * B * Lq * D),
    )(bev_q.astype(jnp.float32), w_q, b_q.reshape(1, D).astype(jnp.float32),
      k, v, w_o, b_o.reshape(1, D).astype(jnp.float32))


# ----------------------------------------------------------------------------
# Glue: pad + NHWC + space-to-depth(2) (one cheap XLA pass; replaces im2col)
# ----------------------------------------------------------------------------
def pad_space_to_depth(x, dtype=jnp.bfloat16):
    """x:(BN,C,H,W) NCHW, H/W even -> (BN, H/2+1, W/2+1, 4C) channels-last."""
    BN, C, H, W = x.shape
    assert H % 2 == 0 and W % 2 == 0
    xp = jnp.pad(x, ((0, 0), (0, 0), (1, 1), (1, 1)))            # pad=1
    xp = xp.transpose(0, 2, 3, 1)                                # NHWC
    Hp, Wp = H + 2, W + 2
    xp = xp.reshape(BN, Hp // 2, 2, Wp // 2, 2, C)
    xp = xp.transpose(0, 1, 3, 2, 4, 5)                          # (.., pr, pc, C)
    return xp.reshape(BN, Hp // 2, Wp // 2, 4 * C).astype(dtype)


def make_tap_weights(w_conv):
    """(3,3,Cin,Cout) 3x3/s2 conv weights -> (4, 4*Cin, Cout) 2x2-tap weights
    matching the space-to-depth channel order (row-parity, col-parity, cin)."""
    kh, kw, cin, cout = w_conv.shape
    assert kh == 3 and kw == 3
    wp = jnp.pad(w_conv, ((0, 1), (0, 1), (0, 0), (0, 0)))       # (4,4,cin,cout)
    wp = wp.reshape(2, 2, 2, 2, cin, cout)                       # (dh,pr,dw,pc,..)
    wp = wp.transpose(0, 2, 1, 3, 4, 5)                          # (dh,dw,pr,pc,..)
    return wp.reshape(4, 4 * cin, cout)


# ----------------------------------------------------------------------------
# BEVFormer (synthetic, deterministic weights)
# ----------------------------------------------------------------------------
class BEVFormerPallas:
    def __init__(self, key, in_ch=3, backbone_ch=128, embed_dims=128,
                 bev_h=8, bev_w=8, use_grid_mask=False, video_test_mode=False):
        self.use_grid_mask = use_grid_mask
        self.video_test_mode = video_test_mode
        self.prev_frame_info = {'prev_bev': None, 'scene_token': None,
                                'prev_pos': 0, 'prev_angle': 0}
        self.bev_h, self.bev_w = bev_h, bev_w
        self.embed_dims = embed_dims
        self.backbone_ch = backbone_ch
        self.in_ch = in_ch

        ks = jax.random.split(key, 7)
        s = 0.02
        bf16 = jnp.bfloat16
        f32 = jnp.float32
        # weights stored bf16 (MXU operands); biases / queries stay f32.
        w_conv = s * jax.random.normal(ks[0], (3, 3, in_ch, backbone_ch), f32)
        self.w_taps = make_tap_weights(w_conv).astype(bf16)      # (4, 4C, C1)
        self.b_backbone = jnp.zeros((backbone_ch,), f32)
        self.w_neck = (s * jax.random.normal(ks[1], (backbone_ch, embed_dims), f32)).astype(bf16)
        self.b_neck = jnp.zeros((embed_dims,), f32)
        self.bev_queries = s * jax.random.normal(ks[2], (bev_h * bev_w, embed_dims), f32)
        self.w_q = (s * jax.random.normal(ks[3], (embed_dims, embed_dims), f32)).astype(bf16)
        self.b_q = jnp.zeros((embed_dims,), f32)
        # fused K||V projection: one pass over the features, lane width 2*D.
        self.w_kv = (s * jax.random.normal(ks[4], (embed_dims, 2 * embed_dims), f32)).astype(bf16)
        self.b_kv = jnp.zeros((2 * embed_dims,), f32)
        self.w_o = (s * jax.random.normal(ks[5], (embed_dims, embed_dims), f32)).astype(bf16)
        self.b_o = jnp.zeros((embed_dims,), f32)

    # ---- extract_img_feat -------------------------------------------------
    def extract_feat(self, img):
        # img: (B, N, C, H, W) NCHW per camera
        B, N, C, H, W = img.shape
        img = img.reshape(B * N, C, H, W)
        # (GridMask skipped: use_grid_mask=False)
        xs2d = pad_space_to_depth(img)                           # (BN, Ho+1, Wo+1, 4C)
        # fused backbone conv (+ReLU) + 1x1 neck, no im2col HBM buffer.
        feat = conv_stem_neck(xs2d, self.w_taps, self.b_backbone,
                              self.w_neck, self.b_neck,
                              ho=H // 2, wo=W // 2)              # (BN, Ho, Wo, D) bf16
        # channels-last feature maps (same content as the NCHW view in the
        # reference; the head flattens them immediately, so no relayout pass).
        feat = feat.reshape(B, N, H // 2, W // 2, self.embed_dims)
        return [feat]

    # ---- pts_bbox_head(only_bev=True) ------------------------------------
    def pts_bbox_head_only_bev(self, img_feats, prev_bev=None):
        feat = img_feats[0]                                      # (B, N, Ho, Wo, D)
        B, N, Ho, Wo, D = feat.shape
        Lkv = N * Ho * Wo
        feat_flat = feat.reshape(B, Lkv, D)                      # free reshape, bf16
        # fused K||V projection, written directly as (B, Lkv, D) each.
        k, v = kv_projection(feat_flat, self.w_kv, self.b_kv)
        # flash cross-attn with fused Q-proj prologue + W_o/bias/residual
        # epilogue (matches the q-proj -> attn -> W_o -> + bev_queries chain;
        # prev_bev unused: video_test_mode=False).
        out = flash_cross_attention(self.bev_queries, self.w_q, self.b_q,
                                    k, v, self.w_o, self.b_o)    # (B, Lq, D) f32
        return out  # new_prev_bev: (B, bev_h*bev_w, embed_dims)

    # ---- test path (forward(return_loss=False)) ---------------------------
    def simple_test(self, img, prev_bev=None):
        img_feats = self.extract_feat(img)
        new_prev_bev = self.pts_bbox_head_only_bev(img_feats, prev_bev)
        return new_prev_bev

    def forward_test(self, img, scene_token="scene0"):
        if scene_token != self.prev_frame_info['scene_token']:
            self.prev_frame_info['prev_bev'] = None
        self.prev_frame_info['scene_token'] = scene_token
        if not self.video_test_mode:
            self.prev_frame_info['prev_bev'] = None
        new_prev_bev = self.simple_test(img, prev_bev=self.prev_frame_info['prev_bev'])
        self.prev_frame_info['prev_bev'] = new_prev_bev
        return new_prev_bev


# ----------------------------------------------------------------------------
if __name__ == "__main__":
    key = jax.random.PRNGKey(0)
    k_img, k_model = jax.random.split(key)

    B, N_cam, C, H, W = 1, 2, 3, 16, 16
    img = jax.random.normal(k_img, (B, N_cam, C, H, W), dtype=jnp.float32)

    model = BEVFormerPallas(k_model, in_ch=C, backbone_ch=128, embed_dims=128,
                            bev_h=8, bev_w=8, use_grid_mask=False,
                            video_test_mode=False)

    bev = model.forward_test(img)
    bev = jax.block_until_ready(bev)
    assert bev.shape == (B, 8 * 8, 128) and bev.dtype == jnp.float32
    assert bool(jnp.all(jnp.isfinite(bev)))
    print("KERNEL_OK")
</pallas_src>

<mosaic_0001>
module attributes {stable_mosaic.version = 11 : i64} {
  func.func @_stem_neck_kernel(%arg0: i32, %arg1: memref<1x9x9x12xbf16, #tpu.memory_space<vmem>>, %arg2: memref<4x12x128xbf16, #tpu.memory_space<vmem>>, %arg3: memref<1x128xf32, #tpu.memory_space<vmem>>, %arg4: memref<128x128xbf16, #tpu.memory_space<vmem>>, %arg5: memref<1x128xf32, #tpu.memory_space<vmem>>, %arg6: memref<1x8x8x128xbf16, #tpu.memory_space<vmem>>) attributes {dimension_semantics = [#tpu.dimension_semantics<parallel>], iteration_bounds = array<i64: 2>, scalar_prefetch = 0 : i64, scratch_operands = 0 : i64, tpu.core_type = #tpu.core_type<tc>, window_params = [{transform_indices = @transform_0, window_bounds = array<i64: 1, 9, 9, 12>}, {pipeline_mode = #tpu.pipeline_mode<synchronous>, transform_indices = @transform_1, window_bounds = array<i64: 4, 12, 128>}, {pipeline_mode = #tpu.pipeline_mode<synchronous>, transform_indices = @transform_2, window_bounds = array<i64: 1, 128>}, {pipeline_mode = #tpu.pipeline_mode<synchronous>, transform_indices = @transform_3, window_bounds = array<i64: 128, 128>}, {pipeline_mode = #tpu.pipeline_mode<synchronous>, transform_indices = @transform_4, window_bounds = array<i64: 1, 128>}, {transform_indices = @transform_5, window_bounds = array<i64: 1, 8, 8, 128>}]} {
    %c0_i32 = arith.constant 0 : i32
    %c8_i32 = arith.constant 8 : i32
    %0 = arith.addi %c0_i32, %c8_i32 : i32
    %c1_i32 = arith.constant 1 : i32
    scf.for %arg7 = %c0_i32 to %0 step %c1_i32  : i32 {
      %cst = arith.constant 0.000000e+00 : f32
      %1 = vector.broadcast %cst : f32 to vector<8x128xf32>
      %c0_i32_1 = arith.constant 0 : i32
      %2 = arith.addi %arg7, %c0_i32_1 : i32
      %c0 = arith.constant 0 : index
      %3 = arith.index_cast %2 : i32 to index
      %c0_2 = arith.constant 0 : index
      %c0_3 = arith.constant 0 : index
      %4 = vector.load %arg1[%c0, %3, %c0_2, %c0_3] : memref<1x9x9x12xbf16, #tpu.memory_space<vmem>>, vector<1x1x8x12xbf16>
      %5 = vector.shape_cast %4 : vector<1x1x8x12xbf16> to vector<8x12xbf16>
      %c0_4 = arith.constant 0 : index
      %c0_5 = arith.constant 0 : index
      %c0_6 = arith.constant 0 : index
      %6 = vector.load %arg2[%c0_4, %c0_5, %c0_6] : memref<4x12x128xbf16, #tpu.memory_space<vmem>>, vector<1x12x128xbf16>
      %7 = vector.shape_cast %6 : vector<1x12x128xbf16> to vector<12x128xbf16>
      %cst_7 = arith.constant dense<0.000000e+00> : vector<8x128xf32>
      %8 = tpu.matmul %5, %7, %cst_7 {dimension_numbers = #tpu.dot_dimension_numbers<[1], [0], [0], [1], [0, 0, 1, 1], [], []>} : vector<8x12xbf16>, vector<12x128xbf16>, vector<8x128xf32> -> vector<8x128xf32>
      %9 = arith.addf %1, %8 : vector<8x128xf32>
      %c0_i32_8 = arith.constant 0 : i32
      %10 = arith.addi %arg7, %c0_i32_8 : i32
      %c0_9 = arith.constant 0 : index
      %11 = arith.index_cast %10 : i32 to index
      %c1 = arith.constant 1 : index
      %c0_10 = arith.constant 0 : index
      %12 = vector.load %arg1[%c0_9, %11, %c1, %c0_10] : memref<1x9x9x12xbf16, #tpu.memory_space<vmem>>, vector<1x1x8x12xbf16>
      %13 = vector.shape_cast %12 : vector<1x1x8x12xbf16> to vector<8x12xbf16>
      %c1_11 = arith.constant 1 : index
      %c0_12 = arith.constant 0 : index
      %c0_13 = arith.constant 0 : index
      %14 = vector.load %arg2[%c1_11, %c0_12, %c0_13] : memref<4x12x128xbf16, #tpu.memory_space<vmem>>, vector<1x12x128xbf16>
      %15 = vector.shape_cast %14 : vector<1x12x128xbf16> to vector<12x128xbf16>
      %cst_14 = arith.constant dense<0.000000e+00> : vector<8x128xf32>
      %16 = tpu.matmul %13, %15, %cst_14 {dimension_numbers = #tpu.dot_dimension_numbers<[1], [0], [0], [1], [0, 0, 1, 1], [], []>} : vector<8x12xbf16>, vector<12x128xbf16>, vector<8x128xf32> -> vector<8x128xf32>
      %17 = arith.addf %9, %16 : vector<8x128xf32>
      %c1_i32_15 = arith.constant 1 : i32
      %18 = arith.addi %arg7, %c1_i32_15 : i32
      %c0_16 = arith.constant 0 : index
      %19 = arith.index_cast %18 : i32 to index
      %c0_17 = arith.constant 0 : index
      %c0_18 = arith.constant 0 : index
      %20 = vector.load %arg1[%c0_16, %19, %c0_17, %c0_18] : memref<1x9x9x12xbf16, #tpu.memory_space<vmem>>, vector<1x1x8x12xbf16>
      %21 = vector.shape_cast %20 : vector<1x1x8x12xbf16> to vector<8x12xbf16>
      %c2 = arith.constant 2 : index
      %c0_19 = arith.constant 0 : index
      %c0_20 = arith.constant 0 : index
      %22 = vector.load %arg2[%c2, %c0_19, %c0_20] : memref<4x12x128xbf16, #tpu.memory_space<vmem>>, vector<1x12x128xbf16>
      %23 = vector.shape_cast %22 : vector<1x12x128xbf16> to vector<12x128xbf16>
      %cst_21 = arith.constant dense<0.000000e+00> : vector<8x128xf32>
      %24 = tpu.matmul %21, %23, %cst_21 {dimension_numbers = #tpu.dot_dimension_numbers<[1], [0], [0], [1], [0, 0, 1, 1], [], []>} : vector<8x12xbf16>, vector<12x128xbf16>, vector<8x128xf32> -> vector<8x128xf32>
      %25 = arith.addf %17, %24 : vector<8x128xf32>
      %c1_i32_22 = arith.constant 1 : i32
      %26 = arith.addi %arg7, %c1_i32_22 : i32
      %c0_23 = arith.constant 0 : index
      %27 = arith.index_cast %26 : i32 to index
      %c1_24 = arith.constant 1 : index
      %c0_25 = arith.constant 0 : index
      %28 = vector.load %arg1[%c0_23, %27, %c1_24, %c0_25] : memref<1x9x9x12xbf16, #tpu.memory_space<vmem>>, vector<1x1x8x12xbf16>
      %29 = vector.shape_cast %28 : vector<1x1x8x12xbf16> to vector<8x12xbf16>
      %c3 = arith.constant 3 : index
      %c0_26 = arith.constant 0 : index
      %c0_27 = arith.constant 0 : index
      %30 = vector.load %arg2[%c3, %c0_26, %c0_27] : memref<4x12x128xbf16, #tpu.memory_space<vmem>>, vector<1x12x128xbf16>
      %31 = vector.shape_cast %30 : vector<1x12x128xbf16> to vector<12x128xbf16>
      %cst_28 = arith.constant dense<0.000000e+00> : vector<8x128xf32>
      %32 = tpu.matmul %29, %31, %cst_28 {dimension_numbers = #tpu.dot_dimension_numbers<[1], [0], [0], [1], [0, 0, 1, 1], [], []>} : vector<8x12xbf16>, vector<12x128xbf16>, vector<8x128xf32> -> vector<8x128xf32>
      %33 = arith.addf %25, %32 : vector<8x128xf32>
      %c0_29 = arith.constant 0 : index
      %c0_30 = arith.constant 0 : index
      %34 = vector.load %arg3[%c0_29, %c0_30] : memref<1x128xf32, #tpu.memory_space<vmem>>, vector<1x128xf32>
      %35 = vector.broadcast %34 : vector<1x128xf32> to vector<8x128xf32>
      %36 = arith.addf %33, %35 : vector<8x128xf32>
      %cst_31 = arith.constant 0.000000e+00 : f32
      %37 = vector.broadcast %cst_31 : f32 to vector<8x128xf32>
      %38 = arith.maximumf %36, %37 : vector<8x128xf32>
      %39 = arith.truncf %38 : vector<8x128xf32> to vector<8x128xbf16>
      %c0_32 = arith.constant 0 : index
      %c0_33 = arith.constant 0 : index
      %40 = vector.load %arg4[%c0_32, %c0_33] : memref<128x128xbf16, #tpu.memory_space<vmem>>, vector<128x128xbf16>
      %cst_34 = arith.constant dense<0.000000e+00> : vector<8x128xf32>
      %41 = tpu.matmul %39, %40, %cst_34 {dimension_numbers = #tpu.dot_dimension_numbers<[1], [0], [0], [1], [0, 0, 1, 1], [], []>} : vector<8x128xbf16>, vector<128x128xbf16>, vector<8x128xf32> -> vector<8x128xf32>
      %c0_35 = arith.constant 0 : index
      %c0_36 = arith.constant 0 : index
      %42 = vector.load %arg5[%c0_35, %c0_36] : memref<1x128xf32, #tpu.memory_space<vmem>>, vector<1x128xf32>
      %43 = vector.broadcast %42 : vector<1x128xf32> to vector<8x128xf32>
      %44 = arith.addf %41, %43 : vector<8x128xf32>
      %45 = arith.truncf %44 : vector<8x128xf32> to vector<8x128xbf16>
      %c0_37 = arith.constant 0 : index
      %46 = arith.index_cast %arg7 : i32 to index
      %c0_38 = arith.constant 0 : index
      %c0_39 = arith.constant 0 : index
      %47 = vector.load %arg6[%c0_37, %46, %c0_38, %c0_39] : memref<1x8x8x128xbf16, #tpu.memory_space<vmem>>, vector<1x1x8x128xbf16>
      %48 = vector.shape_cast %47 : vector<1x1x8x128xbf16> to vector<8x128xbf16>
      %49 = vector.shape_cast %45 : vector<8x128xbf16> to vector<1x1x8x128xbf16>
      tpu.vector_store %arg6[%c0_37, %46, %c0_38, %c0_39], %49 {strides = array<i32>} : memref<1x8x8x128xbf16, #tpu.memory_space<vmem>>, vector<1x1x8x128xbf16>,
    }
    %c8_i32_0 = arith.constant 8 : i32
    return
  }
  func.func @transform_0(%arg0: i32) -> (i32, i32, i32, i32) {
    %c0_i32 = arith.constant 0 : i32
    %c0_i32_0 = arith.constant 0 : i32
    %c0_i32_1 = arith.constant 0 : i32
    %c0_i32_2 = arith.constant 0 : i32
    return %arg0, %c0_i32, %c0_i32_0, %c0_i32_1 : i32, i32, i32, i32
  }
  func.func @transform_1(%arg0: i32) -> (i32, i32, i32) {
    %c0_i32 = arith.constant 0 : i32
    %c0_i32_0 = arith.constant 0 : i32
    %c0_i32_1 = arith.constant 0 : i32
    %c0_i32_2 = arith.constant 0 : i32
    return %c0_i32, %c0_i32_0, %c0_i32_1 : i32, i32, i32
  }
  func.func @transform_2(%arg0: i32) -> (i32, i32) {
    %c0_i32 = arith.constant 0 : i32
    %c0_i32_0 = arith.constant 0 : i32
    %c0_i32_1 = arith.constant 0 : i32
    return %c0_i32, %c0_i32_0 : i32, i32
  }
  func.func @transform_3(%arg0: i32) -> (i32, i32) {
    %c0_i32 = arith.constant 0 : i32
    %c0_i32_0 = arith.constant 0 : i32
    %c0_i32_1 = arith.constant 0 : i32
    return %c0_i32, %c0_i32_0 : i32, i32
  }
  func.func @transform_4(%arg0: i32) -> (i32, i32) {
    %c0_i32 = arith.constant 0 : i32
    %c0_i32_0 = arith.constant 0 : i32
    %c0_i32_1 = arith.constant 0 : i32
    return %c0_i32, %c0_i32_0 : i32, i32
  }
  func.func @transform_5(%arg0: i32) -> (i32, i32, i32, i32) {
    %c0_i32 = arith.constant 0 : i32
    %c0_i32_0 = arith.constant 0 : i32
    %c0_i32_1 = arith.constant 0 : i32
    %c0_i32_2 = arith.constant 0 : i32
    return %arg0, %c0_i32, %c0_i32_0, %c0_i32_1 : i32, i32, i32, i32
  }
}

</mosaic_0001>

<llo_original>
// kernel: tpu_custom_call.1
$region0: #{tpu_custom_call.1}
  #allocation0 [shape = 'u32[]', space=smem, size = 0x4, offset = 0x4, fixed_abs, tag = 'smem constant byte address 0x4 - core index']
  #allocation1 [shape = 'u32[144,128]{1,0:T(1,128)}', space=vmem, size = 0x12000, scoped, tag = 'internal scratch']
  %s0 = inlined_call_operand.vmem [shape: bf16[2,9,9,12], index: 0, kind: input, shape index: {}]
  %s1 = inlined_call_operand.vmem [shape: bf16[4,12,128], index: 1, kind: input, shape index: {}]
  %s2 = inlined_call_operand.vmem [shape: f32[1,128], index: 2, kind: input, shape index: {}]
  %s3 = inlined_call_operand.vmem [shape: bf16[128,128], index: 3, kind: input, shape index: {}]
  %s4 = inlined_call_operand.vmem [shape: f32[1,128], index: 4, kind: input, shape index: {}]
  %s5 = inlined_call_operand.hbm [shape: bf16[2,8,8,128], index: 5, kind: output, shape index: {}]
  %s6 = sld [smem:[#allocation0]]
  $region60: #{tpu_custom_call.1} parent=0
    _
  %s8 = ssub.s32 1, %s6
  %s9 = scalar_select 0, %s8, %s6
  $region1: #{tpu_custom_call.1} parent=0
    #allocation2 [shape = 'u8[32768]{0}', space=vmem, size = 0x8000, scoped, tag = 'output window, operand 0']
    #allocation3 [shape = 's32[2]{0}', space=sflag, size = 0x8, scoped, tag = 'scoped memory for tpu_custom_call.1']
    %10 = vsyncpa [#allocation3], 0
    %s11 = scalar_lea.sflag [#allocation3], 1
    %12 = vsyncpa %s11, 0
    loop: start=0, step=1, limit=4
    $region2: #{tpu_custom_call.1} parent=1 // loop_pre_header
      _
    $region3: #{tpu_custom_call.1} parent=1 // loop_header
      %s14 = sphi 0, %s18
      %p15 = scmp.ge.s32.totalorder %s14, 4
      %s24 = sphi 0, %s26
      %s27 = sphi 0, %s24
      %s28 = sphi 0, %s27
      %s44 = sphi 0, %s28
      %s48 = sphi 0, %s48
      %s50 = sphi 0, %s48
      %s51 = sphi 0, %s50
      %s65 = sphi 0, %s51
      %s69 = sphi 0, %s69
      %s71 = sphi 0, %s69
      %s72 = sphi 0, %s71
      %s86 = sphi 0, %s72
      %s90 = sphi 0, %s90
      %s92 = sphi 0, %s90
      %s93 = sphi 0, %s92
      %s107 = sphi 0, %s93
      %s111 = sphi 0, %s111
      %s113 = sphi 0, %s111
      %s114 = sphi 0, %s113
      %s128 = sphi 0, %s114
      %s134 = sphi 0, %s136
      %s137 = sphi 0, %s134
      %s138 = sphi 0, %s137
      %s154 = sphi 0, %s138
    $region4: #{tpu_custom_call.1} parent=1 // loop_header_branch
      %17 = sbr.rel (%p15) target = $region8
    $region5: #{tpu_custom_call.1} parent=1 // loop_body
      %s19 = ssub.s32 %s14, 1
      %s20 = ssub.s32 %s14, 2
      %s21 = sadd.s32 %s14, 1
      %s22 = ssub.s32 %s14, %s21
      %p23 = scmp.eq.s32.totalorder %s22, 0
      %s25 = sadd.s32 %s24, 1
      %s26 = scalar_select %p23, %s24, %s25
      %p29 = pneg %p23
      %p30 = scmp.eq.s32.totalorder %s14, 1
      %p31 = por %p29, %p30
      %p32 = scmp.ne.s32.totalorder %s24, %s27
      %p33 = scmp.eq.s32.totalorder %s14, 0
      %p34 = por %p32, %p33
      %p35 = scmp.ne.s32.totalorder %s24, %s27
      %p36 = scmp.eq.s32.totalorder %s19, 1
      %p37 = por %p35, %p36
      %p38 = scmp.ne.s32.totalorder %s27, %s28
      %p39 = scmp.eq.s32.totalorder %s19, 0
      %p40 = por %p38, %p39
      %p41 = scmp.ne.s32.totalorder %s27, %s28
      %p42 = scmp.eq.s32.totalorder %s20, 1
      %p43 = por %p41, %p42
      %p45 = scmp.ne.s32.totalorder %s28, %s44
      %p46 = scmp.eq.s32.totalorder %s20, 0
      %p47 = por %p45, %p46
      %s49 = sadd.s32 %s48, 1
      %p52 = scmp.eq.s32.totalorder %s14, 1
      %p53 = scmp.ne.s32.totalorder %s48, %s50
      %p54 = scmp.eq.s32.totalorder %s14, 0
      %p55 = por %p53, %p54
      %p56 = scmp.ne.s32.totalorder %s48, %s50
      %p57 = scmp.eq.s32.totalorder %s19, 1
      %p58 = por %p56, %p57
      %p59 = scmp.ne.s32.totalorder %s50, %s51
      %p60 = scmp.eq.s32.totalorder %s19, 0
      %p61 = por %p59, %p60
      %p62 = scmp.ne.s32.totalorder %s50, %s51
      %p63 = scmp.eq.s32.totalorder %s20, 1
      %p64 = por %p62, %p63
      %p66 = scmp.ne.s32.totalorder %s51, %s65
      %p67 = scmp.eq.s32.totalorder %s20, 0
      %p68 = por %p66, %p67
      %s70 = sadd.s32 %s69, 1
      %p73 = scmp.eq.s32.totalorder %s14, 1
      %p74 = scmp.ne.s32.totalorder %s69, %s71
      %p75 = scmp.eq.s32.totalorder %s14, 0
      %p76 = por %p74, %p75
      %p77 = scmp.ne.s32.totalorder %s69, %s71
      %p78 = scmp.eq.s32.totalorder %s19, 1
      %p79 = por %p77, %p78
      %p80 = scmp.ne.s32.totalorder %s71, %s72
      %p81 = scmp.eq.s32.totalorder %s19, 0
      %p82 = por %p80, %p81
      %p83 = scmp.ne.s32.totalorder %s71, %s72
      %p84 = scmp.eq.s32.totalorder %s20, 1
      %p85 = por %p83, %p84
      %p87 = scmp.ne.s32.totalorder %s72, %s86
      %p88 = scmp.eq.s32.totalorder %s20, 0
      %p89 = por %p87, %p88
      %s91 = sadd.s32 %s90, 1
      %p94 = scmp.eq.s32.totalorder %s14, 1
      %p95 = scmp.ne.s32.totalorder %s90, %s92
      %p96 = scmp.eq.s32.totalorder %s14, 0
      %p97 = por %p95, %p96
      %p98 = scmp.ne.s32.totalorder %s90, %s92
      %p99 = scmp.eq.s32.totalorder %s19, 1
      %p100 = por %p98, %p99
      %p101 = scmp.ne.s32.totalorder %s92, %s93
      %p102 = scmp.eq.s32.totalorder %s19, 0
      %p103 = por %p101, %p102
      %p104 = scmp.ne.s32.totalorder %s92, %s93
      %p105 = scmp.eq.s32.totalorder %s20, 1
      %p106 = por %p104, %p105
      %p108 = scmp.ne.s32.totalorder %s93, %s107
      %p109 = scmp.eq.s32.totalorder %s20, 0
      %p110 = por %p108, %p109
      %s112 = sadd.s32 %s111, 1
      %p115 = scmp.eq.s32.totalorder %s14, 1
      %p116 = scmp.ne.s32.totalorder %s111, %s113
      %p117 = scmp.eq.s32.totalorder %s14, 0
      %p118 = por %p116, %p117
      %p119 = scmp.ne.s32.totalorder %s111, %s113
      %p120 = scmp.eq.s32.totalorder %s19, 1
      %p121 = por %p119, %p120
      %p122 = scmp.ne.s32.totalorder %s113, %s114
      %p123 = scmp.eq.s32.totalorder %s19, 0
      %p124 = por %p122, %p123
      %p125 = scmp.ne.s32.totalorder %s113, %s114
      %p126 = scmp.eq.s32.totalorder %s20, 1
      %p127 = por %p125, %p126
      %p129 = scmp.ne.s32.totalorder %s114, %s128
      %p130 = scmp.eq.s32.totalorder %s20, 0
      %p131 = por %p129, %p130
      %s132 = ssub.s32 %s14, %s21
      %p133 = scmp.eq.s32.totalorder %s132, 0
      %s135 = sadd.s32 %s134, 1
      %s136 = scalar_select %p133, %s134, %s135
      %p139 = pneg %p133
      %p140 = scmp.eq.s32.totalorder %s14, 1
      %p141 = por %p139, %p140
      %p142 = scmp.ne.s32.totalorder %s134, %s137
      %p143 = scmp.eq.s32.totalorder %s14, 0
      %p144 = por %p142, %p143
      %p145 = scmp.ne.s32.totalorder %s134, %s137
      %p146 = scmp.eq.s32.totalorder %s19, 1
      %p147 = por %p145, %p146
      %p148 = scmp.ne.s32.totalorder %s137, %s138
      %p149 = scmp.eq.s32.totalorder %s19, 0
      %p150 = por %p148, %p149
      %p151 = scmp.ne.s32.totalorder %s137, %s138
      %p152 = scmp.eq.s32.totalorder %s20, 1
      %p153 = por %p151, %p152
      %p155 = scmp.ne.s32.totalorder %s138, %s154
      %p156 = scmp.eq.s32.totalorder %s20, 0
      %p157 = por %p155, %p156
      %p158 = scmp.le.s32.totalorder 1, %s14
      %p159 = scmp.lt.s32.totalorder %s14, 3
      %p160 = pnand %p158, %p159
      %p161 = pneg %p160
      // Predicated region
      $region9: #{tpu_custom_call.1} parent=5 // pred_check
        _
      $region10: #{tpu_custom_call.1} parent=5 // pred_check_branch
        %163 = sbr.rel (%p160) target = $region12
      $region11: #{tpu_custom_call.1} parent=5 // pred_region
        %s164 = ssub.s32 %s14, 1
        // Predicated region
        $region13: #{tpu_custom_call.1} parent=11 // pred_check
          %p165 = pneg %p61
        $region14: #{tpu_custom_call.1} parent=11 // pred_check_branch
          %167 = sbr.rel (%p165) target = $region16
        $region15: #{tpu_custom_call.1} parent=11 // pred_region
          _
        $region16: #{tpu_custom_call.1} parent=11 // pred_fallthru
          _
        // Predicated region
        $region17: #{tpu_custom_call.1} parent=11 // pred_check
          %p168 = pneg %p82
        $region18: #{tpu_custom_call.1} parent=11 // pred_check_branch
          %170 = sbr.rel (%p168) target = $region20
        $region19: #{tpu_custom_call.1} parent=11 // pred_region
          _
        $region20: #{tpu_custom_call.1} parent=11 // pred_fallthru
          _
        // Predicated region
        $region21: #{tpu_custom_call.1} parent=11 // pred_check
          %p171 = pneg %p103
        $region22: #{tpu_custom_call.1} parent=11 // pred_check_branch
          %173 = sbr.rel (%p171) target = $region24
        $region23: #{tpu_custom_call.1} parent=11 // pred_region
          _
        $region24: #{tpu_custom_call.1} parent=11 // pred_fallthru
          _
        // Predicated region
        $region25: #{tpu_custom_call.1} parent=11 // pred_check
          %p174 = pneg %p124
        $region26: #{tpu_custom_call.1} parent=11 // pred_check_branch
          %176 = sbr.rel (%p174) target = $region28
        $region27: #{tpu_custom_call.1} parent=11 // pred_region
          _
        $region28: #{tpu_custom_call.1} parent=11 // pred_fallthru
          _
      $region12: #{tpu_custom_call.1} parent=5 // pred_fallthru
        _
      %p177 = scmp.lt.s32.totalorder %s14, 2
      // Predicated region
      $region29: #{tpu_custom_call.1} parent=5 // pred_check
        %p178 = pneg %p177
      $region30: #{tpu_custom_call.1} parent=5 // pred_check_branch
        %180 = sbr.rel (%p178) target = $region32
      $region31: #{tpu_custom_call.1} parent=5 // pred_region
        // Predicated region
        $region33: #{tpu_custom_call.1} parent=31 // pred_check
          %p181 = pneg %p34
        $region34: #{tpu_custom_call.1} parent=31 // pred_check_branch
          %183 = sbr.rel (%p181) target = $region36
        $region35: #{tpu_custom_call.1} parent=31 // pred_region
          %p184 = scmp.lt.s32.totalorder %s14, 1
          %s185 = scalar_select %p184, %s14, 1
          %s186 = smul.addr %s185, 18
          %s187 = smul.addr %s186, 4
          %s188 = scalar_lea.vmem %s0, %s187
        $region36: #{tpu_custom_call.1} parent=31 // pred_fallthru
          _
      $region32: #{tpu_custom_call.1} parent=5 // pred_fallthru
        _
      %p189 = scmp.le.s32.totalorder 1, %s14
      %p190 = scmp.lt.s32.totalorder %s14, 3
      %p191 = pnand %p189, %p190
      %p192 = pneg %p191
      // Predicated region
      $region37: #{tpu_custom_call.1} parent=5 // pred_check
        _
      $region38: #{tpu_custom_call.1} parent=5 // pred_check_branch
        %194 = sbr.rel (%p191) target = $region40
      $region39: #{tpu_custom_call.1} parent=5 // pred_region
        %s195 = ssub.s32 %s14, 1
        %p196 = scmp.lt.s32.totalorder %s19, 1
        %s197 = scalar_select %p196, %s19, 1
        %s198 = smul.addr %s197, 18
        %s199 = smul.addr %s198, 4
        %s200 = scalar_lea.vmem %s0, %s199
        %p201 = pneg %p40
        %p202 = pneg %p37
        %p203 = pneg %p61
        %p204 = pneg %p58
        %p205 = pneg %p82
        %p206 = pneg %p79
        %p207 = pneg %p103
        %p208 = pneg %p100
        %p209 = pneg %p124
        %p210 = pneg %p121
        %p211 = pneg %p150
        %p212 = pneg %p147
        %s213 = sand.u32 %s137, 1
        %s214 = scalar_lea.sflag [#allocation3], %s213
        %s215 = sand.u32 %s137, 1
        %s216 = smul.addr %s215, 32
        %s217 = scalar_lea.vmem [#allocation2], %s216
        %p218 = scmp.lt.s32.totalorder %s19, 1
        %s219 = scalar_select %p218, %s19, 1
        %s220 = smul.addr %s219, 18
        %s221 = smul.addr %s220, 4
        %s222 = scalar_lea.vmem %s0, %s221
        loop: start=0, step=1, limit=8
        $region41: #{tpu_custom_call.1} parent=39 // loop_pre_header
          _
        $region42: #{tpu_custom_call.1} parent=39 // loop_header
          %s225 = sphi 0, %s229
          %p226 = scmp.ge.s32.totalorder %s225, 8
        $region43: #{tpu_custom_call.1} parent=39 // loop_header_branch
          %228 = sbr.rel (%p226) target = $region47
        $region44: #{tpu_custom_call.1} parent=39 // loop_body
          %s230 = smul.u32 %s225, 2
          %s231 = smul.addr %s230, 4
          %s232 = scalar_lea.vmem %s222, %s231
          %v233 = vld [vmem:[%s232] sm:$0xf]
          %v234 = vld [vmem:[%s1] sm:$0xf]
          %v235 = vld [vmem:[%s1 + $0x4] sm:$0x3]
          %v236 = vld [vmem:[%s232 + $0x4] sm:$0x1]
          %s237 = scalar_lea.vmem %s1, 8
          %v238 = vld [vmem:[%s237] sm:$0xf]
          %v239 = vld [vmem:[%s237 + $0x4] sm:$0x3]
          %v242 = vunpack.c.l.b16 %v233
          %v243 = vunpack.c.l.b16 %v236
          %v244 = vpack.c.b16 %v243, %v242
          %v246 = vshrl.u32 %v244, 16
          %v248 = vshll.u32 %v244, 16
          %v250 = vrot.slane %v248, 1
          %v251 = vor.u32 %v246, %v250
          %v254 = vunpack.c.l.b16 %v238
          %v255 = vunpack.c.l.b16 %v239
          %v256 = vpack.c.b16 %v255, %v254
          %vm257 = vcmask 97280
          %v259 = vsel %vm257, %v251, 0
          %vm261 = vcmask 1045504
          %v263 = vsel %vm261, %v256, 0
          %265 = vmatprep.subr.bf16.mxu0 0
          %266 = vmatpush1.bf16.msra.mxu0 %v263
          %267 = vmatprep.subr.bf16.mxu0 0
          %268 = vmatpush1.bf16.msra.mxu0 0
          %269 = vmatprep.subr.bf16.mxu0 0
          %270 = vmatpush1.bf16.msra.mxu0 0
          %271 = vmatprep.subr.bf16.mxu0 0
          %272 = vmatpush1.bf16.msra.mxu0 0
          %273 = vmatprep.subr.bf16.mxu0 0
          %274 = vmatpush1.bf16.msra.mxu0 0
          %275 = vmatprep.subr.bf16.mxu0 0
          %276 = vmatpush1.bf16.msra.mxu0 0
          %277 = vmatprep.subr.bf16.mxu0 0
          %278 = vmatpush1.bf16.msra.mxu0 0
          %279 = vmatprep.subr.bf16.mxu0 0
          %280 = vmatpush1.bf16.msra.mxu0 0
          %281 = vmatprep.subr.bf16.mxu0 0
          %282 = vmatpush1.bf16.msra.mxu0 0
          %283 = vmatprep.subr.bf16.mxu0 0
          %284 = vmatpush1.bf16.msra.mxu0 0
          %285 = vmatprep.subr.bf16.mxu0 0
          %286 = vmatpush1.bf16.msra.mxu0 0
          %287 = vmatprep.subr.bf16.mxu0 0
          %288 = vmatpush1.bf16.msra.mxu0 0
          %289 = vmatprep.subr.bf16.mxu0 0
          %290 = vmatpush1.bf16.msra.mxu0 0
          %291 = vmatprep.subr.bf16.mxu0 0
          %292 = vmatpush1.bf16.msra.mxu0 0
          %293 = vmatprep.subr.bf16.mxu0 0
          %294 = vmatpush1.bf16.msra.mxu0 0
          %295 = vmatprep.subr.bf16.mxu0 0
          %296 = vmatpush1.bf16.msra.mxu0 0
          %297 = vmatprep.mubr.bf16.mxu0 0
          %298 = vmatmul.mubr.bf16.gmra.mrb[0].mxu0 %v259
          %v299 = vpop.f32.mrb[0].mxu0
          %v300 = vadd.f32 0.0, %v299
          %v301 = vpop.f32.mrb[0].mxu0
          %v302 = vpop.f32.mrb[0].mxu0
          %v303 = vpop.f32.mrb[0].mxu0
          %304 = vdwg.mxu0
          %v307 = vunpack.c.l.b16 %v234
          %v308 = vunpack.c.l.b16 %v235
          %v309 = vpack.c.b16 %v308, %v307
          %v311 = vsel %vm257, %v233, 0
          %v314 = vsel %vm261, %v309, 0
          %316 = vmatprep.subr.bf16.mxu0 0
          %317 = vmatpush1.bf16.msra.mxu0 %v314
          %318 = vmatprep.subr.bf16.mxu0 0
          %319 = vmatpush1.bf16.msra.mxu0 0
          %320 = vmatprep.subr.bf16.mxu0 0
          %321 = vmatpush1.bf16.msra.mxu0 0
          %322 = vmatprep.subr.bf16.mxu0 0
          %323 = vmatpush1.bf16.msra.mxu0 0
          %324 = vmatprep.subr.bf16.mxu0 0
          %325 = vmatpush1.bf16.msra.mxu0 0
          %326 = vmatprep.subr.bf16.mxu0 0
          %327 = vmatpush1.bf16.msra.mxu0 0
          %328 = vmatprep.subr.bf16.mxu0 0
          %329 = vmatpush1.bf16.msra.mxu0 0
          %330 = vmatprep.subr.bf16.mxu0 0
          %331 = vmatpush1.bf16.msra.mxu0 0
          %332 = vmatprep.subr.bf16.mxu0 0
          %333 = vmatpush1.bf16.msra.mxu0 0
          %334 = vmatprep.subr.bf16.mxu0 0
          %335 = vmatpush1.bf16.msra.mxu0 0
          %336 = vmatprep.subr.bf16.mxu0 0
          %337 = vmatpush1.bf16.msra.mxu0 0
          %338 = vmatprep.subr.bf16.mxu0 0
          %339 = vmatpush1.bf16.msra.mxu0 0
          %340 = vmatprep.subr.bf16.mxu0 0
          %341 = vmatpush1.bf16.msra.mxu0 0
          %342 = vmatprep.subr.bf16.mxu0 0
          %343 = vmatpush1.bf16.msra.mxu0 0
          %344 = vmatprep.subr.bf16.mxu0 0
          %345 = vmatpush1.bf16.msra.mxu0 0
          %346 = vmatprep.subr.bf16.mxu0 0
          %347 = vmatpush1.bf16.msra.mxu0 0
          %348 = vmatprep.mubr.bf16.mxu0 0
          %349 = vmatmul.mubr.bf16.gmra.mrb[0].mxu0 %v311
          %v350 = vpop.f32.mrb[0].mxu0
          %v351 = vadd.f32 %v300, %v350
          %v352 = vpop.f32.mrb[0].mxu0
          %v353 = vpop.f32.mrb[0].mxu0
          %v354 = vpop.f32.mrb[0].mxu0
          %355 = vdwg.mxu0
          %s356 = sadd.s32 %s225, 1
          %s357 = smul.u32 %s356, 2
          %s358 = smul.addr %s357, 4
          %s359 = scalar_lea.vmem %s222, %s358
          %v360 = vld [vmem:[%s359] sm:$0xf]
          %s361 = scalar_lea.vmem %s1, 16
          %v362 = vld [vmem:[%s361] sm:$0xf]
          %v363 = vld [vmem:[%s361 + $0x4] sm:$0x3]
          %v366 = vunpack.c.l.b16 %v362
          %v367 = vunpack.c.l.b16 %v363
          %v368 = vpack.c.b16 %v367, %v366
          %v370 = vsel %vm257, %v360, 0
          %v373 = vsel %vm261, %v368, 0
          %375 = vmatprep.subr.bf16.mxu0 0
          %376 = vmatpush1.bf16.msra.mxu0 %v373
          %377 = vmatprep.subr.bf16.mxu0 0
          %378 = vmatpush1.bf16.msra.mxu0 0
          %379 = vmatprep.subr.bf16.mxu0 0
          %380 = vmatpush1.bf16.msra.mxu0 0
          %381 = vmatprep.subr.bf16.mxu0 0
          %382 = vmatpush1.bf16.msra.mxu0 0
          %383 = vmatprep.subr.bf16.mxu0 0
          %384 = vmatpush1.bf16.msra.mxu0 0
          %385 = vmatprep.subr.bf16.mxu0 0
          %386 = vmatpush1.bf16.msra.mxu0 0
          %387 = vmatprep.subr.bf16.mxu0 0
          %388 = vmatpush1.bf16.msra.mxu0 0
          %389 = vmatprep.subr.bf16.mxu0 0
          %390 = vmatpush1.bf16.msra.mxu0 0
          %391 = vmatprep.subr.bf16.mxu0 0
          %392 = vmatpush1.bf16.msra.mxu0 0
          %393 = vmatprep.subr.bf16.mxu0 0
          %394 = vmatpush1.bf16.msra.mxu0 0
          %395 = vmatprep.subr.bf16.mxu0 0
          %396 = vmatpush1.bf16.msra.mxu0 0
          %397 = vmatprep.subr.bf16.mxu0 0
          %398 = vmatpush1.bf16.msra.mxu0 0
          %399 = vmatprep.subr.bf16.mxu0 0
          %400 = vmatpush1.bf16.msra.mxu0 0
          %401 = vmatprep.subr.bf16.mxu0 0
          %402 = vmatpush1.bf16.msra.mxu0 0
          %403 = vmatprep.subr.bf16.mxu0 0
          %404 = vmatpush1.bf16.msra.mxu0 0
          %405 = vmatprep.subr.bf16.mxu0 0
          %406 = vmatpush1.bf16.msra.mxu0 0
          %407 = vmatprep.mubr.bf16.mxu0 0
          %408 = vmatmul.mubr.bf16.gmra.mrb[0].mxu0 %v370
          %v409 = vpop.f32.mrb[0].mxu0
          %v410 = vadd.f32 0.0, %v409
          %v411 = vpop.f32.mrb[0].mxu0
          %v412 = vpop.f32.mrb[0].mxu0
          %v413 = vpop.f32.mrb[0].mxu0
          %414 = vdwg.mxu0
          %v415 = vadd.f32 %v351, %v410
          %v416 = vld [vmem:[%s359] sm:$0xf]
          %v417 = vld [vmem:[%s359 + $0x4] sm:$0x1]
          %s418 = scalar_lea.vmem %s1, 24
          %v419 = vld [vmem:[%s418] sm:$0xf]
          %v420 = vld [vmem:[%s418 + $0x4] sm:$0x3]
          %v423 = vunpack.c.l.b16 %v416
          %v424 = vunpack.c.l.b16 %v417
          %v425 = vpack.c.b16 %v424, %v423
          %v427 = vshrl.u32 %v425, 16
          %v429 = vshll.u32 %v425, 16
          %v431 = vrot.slane %v429, 1
          %v432 = vor.u32 %v427, %v431
          %v435 = vunpack.c.l.b16 %v419
          %v436 = vunpack.c.l.b16 %v420
          %v437 = vpack.c.b16 %v436, %v435
          %v439 = vsel %vm257, %v432, 0
          %v442 = vsel %vm261, %v437, 0
          %444 = vmatprep.subr.bf16.mxu0 0
          %445 = vmatpush1.bf16.msra.mxu0 %v442
          %446 = vmatprep.subr.bf16.mxu0 0
          %447 = vmatpush1.bf16.msra.mxu0 0
          %448 = vmatprep.subr.bf16.mxu0 0
          %449 = vmatpush1.bf16.msra.mxu0 0
          %450 = vmatprep.subr.bf16.mxu0 0
          %451 = vmatpush1.bf16.msra.mxu0 0
          %452 = vmatprep.subr.bf16.mxu0 0
          %453 = vmatpush1.bf16.msra.mxu0 0
          %454 = vmatprep.subr.bf16.mxu0 0
          %455 = vmatpush1.bf16.msra.mxu0 0
          %456 = vmatprep.subr.bf16.mxu0 0
          %457 = vmatpush1.bf16.msra.mxu0 0
          %458 = vmatprep.subr.bf16.mxu0 0
          %459 = vmatpush1.bf16.msra.mxu0 0
          %460 = vmatprep.subr.bf16.mxu0 0
          %461 = vmatpush1.bf16.msra.mxu0 0
          %462 = vmatprep.subr.bf16.mxu0 0
          %463 = vmatpush1.bf16.msra.mxu0 0
          %464 = vmatprep.subr.bf16.mxu0 0
          %465 = vmatpush1.bf16.msra.mxu0 0
          %466 = vmatprep.subr.bf16.mxu0 0
          %467 = vmatpush1.bf16.msra.mxu0 0
          %468 = vmatprep.subr.bf16.mxu0 0
          %469 = vmatpush1.bf16.msra.mxu0 0
          %470 = vmatprep.subr.bf16.mxu0 0
          %471 = vmatpush1.bf16.msra.mxu0 0
          %472 = vmatprep.subr.bf16.mxu0 0
          %473 = vmatpush1.bf16.msra.mxu0 0
          %474 = vmatprep.subr.bf16.mxu0 0
          %475 = vmatpush1.bf16.msra.mxu0 0
          %476 = vmatprep.mubr.bf16.mxu0 0
          %477 = vmatmul.mubr.bf16.gmra.mrb[0].mxu0 %v439
          %v478 = vpop.f32.mrb[0].mxu0
          %v479 = vadd.f32 0.0, %v478
          %v480 = vpop.f32.mrb[0].mxu0
          %v481 = vpop.f32.mrb[0].mxu0
          %v482 = vpop.f32.mrb[0].mxu0
          %483 = vdwg.mxu0
          %v484 = vadd.f32 %v415, %v479
          %v485 = vld [vmem:[%s2] sm:$0x1]
          %v487 = vlaneseq
          %v488 = vshrl.u32 %v487, 7
          %v489 = vsub.s32 0, %v488
          %v490 = vrot.slane %v485, %v489
          %v492 = vadd.f32 %v484, %v490
          %v493 = vmax.f32 %v492, 0.0
          %v494 = vpack.c.bf16 %v493, %v493
          %v495 = vld [vmem:[%s3] sm:$0xf]
          %v496 = vld [vmem:[%s3 + $0x4] sm:$0xf]
          %v497 = vld [vmem:[%s3 + $0x8] sm:$0xf]
          %v498 = vld [vmem:[%s3 + $0xc] sm:$0xf]
          %v499 = vld [vmem:[%s3 + $0x10] sm:$0xf]
          %v500 = vld [vmem:[%s3 + $0x14] sm:$0xf]
          %v501 = vld [vmem:[%s3 + $0x18] sm:$0xf]
          %v502 = vld [vmem:[%s3 + $0x1c] sm:$0xf]
          %v503 = vld [vmem:[%s3 + $0x20] sm:$0xf]
          %v504 = vld [vmem:[%s3 + $0x24] sm:$0xf]
          %v505 = vld [vmem:[%s3 + $0x28] sm:$0xf]
          %v506 = vld [vmem:[%s3 + $0x2c] sm:$0xf]
          %v507 = vld [vmem:[%s3 + $0x30] sm:$0xf]
          %v508 = vld [vmem:[%s3 + $0x34] sm:$0xf]
          %v509 = vld [vmem:[%s3 + $0x38] sm:$0xf]
          %v510 = vld [vmem:[%s3 + $0x3c] sm:$0xf]
          %v511 = vld [vmem:[%s4] sm:$0x1]
          %v513 = vlaneseq
          %v514 = vshrl.u32 %v513, 7
          %v515 = vsub.s32 0, %v514
          %v516 = vrot.slane %v511, %v515
          %v534 = vunpack.c.l.b16 %v495
          %v535 = vunpack.c.l.b16 %v496
          %v536 = vunpack.c.l.b16 %v497
          %v537 = vunpack.c.l.b16 %v498
          %v538 = vunpack.c.l.b16 %v499
          %v539 = vunpack.c.l.b16 %v500
          %v540 = vunpack.c.l.b16 %v501
          %v541 = vunpack.c.l.b16 %v502
          %v542 = vunpack.c.l.b16 %v503
          %v543 = vunpack.c.l.b16 %v504
          %v544 = vunpack.c.l.b16 %v505
          %v545 = vunpack.c.l.b16 %v506
          %v546 = vunpack.c.l.b16 %v507
          %v547 = vunpack.c.l.b16 %v508
          %v548 = vunpack.c.l.b16 %v509
          %v549 = vunpack.c.l.b16 %v510
          %v550 = vpack.c.b16 %v535, %v534
          %v551 = vpack.c.b16 %v537, %v536
          %v552 = vpack.c.b16 %v539, %v538
          %v553 = vpack.c.b16 %v541, %v540
          %v554 = vpack.c.b16 %v543, %v542
          %v555 = vpack.c.b16 %v545, %v544
          %v556 = vpack.c.b16 %v547, %v546
          %v557 = vpack.c.b16 %v549, %v548
          %566 = vmatprep.subr.bf16.mxu0 0
          %567 = vmatpush1.bf16.msra.mxu0 %v550
          %568 = vmatprep.subr.bf16.mxu0 0
          %569 = vmatpush1.bf16.msra.mxu0 %v551
          %570 = vmatprep.subr.bf16.mxu0 0
          %571 = vmatpush1.bf16.msra.mxu0 %v552
          %572 = vmatprep.subr.bf16.mxu0 0
          %573 = vmatpush1.bf16.msra.mxu0 %v553
          %574 = vmatprep.subr.bf16.mxu0 0
          %575 = vmatpush1.bf16.msra.mxu0 %v554
          %576 = vmatprep.subr.bf16.mxu0 0
          %577 = vmatpush1.bf16.msra.mxu0 %v555
          %578 = vmatprep.subr.bf16.mxu0 0
          %579 = vmatpush1.bf16.msra.mxu0 %v556
          %580 = vmatprep.subr.bf16.mxu0 0
          %581 = vmatpush1.bf16.msra.mxu0 %v557
          %582 = vmatprep.subr.bf16.mxu0 0
          %583 = vmatpush1.bf16.msra.mxu0 0
          %584 = vmatprep.subr.bf16.mxu0 0
          %585 = vmatpush1.bf16.msra.mxu0 0
          %586 = vmatprep.subr.bf16.mxu0 0
          %587 = vmatpush1.bf16.msra.mxu0 0
          %588 = vmatprep.subr.bf16.mxu0 0
          %589 = vmatpush1.bf16.msra.mxu0 0
          %590 = vmatprep.subr.bf16.mxu0 0
          %591 = vmatpush1.bf16.msra.mxu0 0
          %592 = vmatprep.subr.bf16.mxu0 0
          %593 = vmatpush1.bf16.msra.mxu0 0
          %594 = vmatprep.subr.bf16.mxu0 0
          %595 = vmatpush1.bf16.msra.mxu0 0
          %596 = vmatprep.subr.bf16.mxu0 0
          %597 = vmatpush1.bf16.msra.mxu0 0
          %598 = vmatprep.mubr.bf16.mxu0 0
          %599 = vmatmul.mubr.bf16.gmra.mrb[0].mxu0 %v494
          %v600 = vpop.f32.mrb[0].mxu0
          %v601 = vadd.f32 %v516, %v600
          %v602 = vpop.f32.mrb[0].mxu0
          %v603 = vpop.f32.mrb[0].mxu0
          %v604 = vpop.f32.mrb[0].mxu0
          %605 = vdwg.mxu0
          %v606 = vpack.c.bf16 %v601, %v601
          %s607 = smul.addr %s225, 4
          %s608 = scalar_lea.vmem %s217, %s607 [#allocation2]
          %609 = vst [vmem:[%s608] sm:$0xf] %v606
        $region45: #{tpu_custom_call.1} parent=39 // loop_footer
          %s229 = sadd.s32 1, %s225
        $region46: #{tpu_custom_call.1} parent=39 // loop_footer_branch
          %224 = sbr.rel target = $region42
        $region47: #{tpu_custom_call.1} parent=39 // loop_exit
          _
        %s610 = sand.u32 %s137, 1
        %s611 = scalar_lea.sflag [#allocation3], %s610
        %s612 = sand.u32 %s137, 1
        %s613 = smul.addr %s612, 32
        %s614 = scalar_lea.vmem [#allocation2], %s613
        // Predicated region
        $region48: #{tpu_custom_call.1} parent=39 // pred_check
          %p615 = pneg %p147
        $region49: #{tpu_custom_call.1} parent=39 // pred_check_branch
          %617 = sbr.rel (%p615) target = $region51
        $region50: #{tpu_custom_call.1} parent=39 // pred_region
          %s619 = ssub.s32 512, 512
          %620 = vsyncadd %s611, %s619
          %s621 = smul.addr %s19, 8
          %s622 = smul.addr %s621, 64
          %s623 = scalar_lea.hbm %s5, %s622
          %s624 = sshll.u32 %s614, 4
          %s625 = int_to_ptr.vmem [resolvable:$true] %s624
          %630 = dma.vmem_to_hbm [thread:$0]  %s625, 512, %s623, %s611, 64, 64, 4
        $region51: #{tpu_custom_call.1} parent=39 // pred_fallthru
          _
      $region40: #{tpu_custom_call.1} parent=5 // pred_fallthru
        _
      %p631 = scmp.le.s32.totalorder 2, %s14
      // Predicated region
      $region52: #{tpu_custom_call.1} parent=5 // pred_check
        %p632 = pneg %p631
      $region53: #{tpu_custom_call.1} parent=5 // pred_check_branch
        %634 = sbr.rel (%p632) target = $region55
      $region54: #{tpu_custom_call.1} parent=5 // pred_region
        %s635 = ssub.s32 %s14, 2
        // Predicated region
        $region56: #{tpu_custom_call.1} parent=54 // pred_check
          %p636 = pneg %p153
        $region57: #{tpu_custom_call.1} parent=54 // pred_check_branch
          %638 = sbr.rel (%p636) target = $region59
        $region58: #{tpu_custom_call.1} parent=54 // pred_region
          %s639 = sand.u32 %s138, 1
          %s640 = scalar_lea.sflag [#allocation3], %s639
          %s641 = sand.u32 %s138, 1
          %s642 = smul.addr %s641, 32
          %s643 = scalar_lea.vmem [#allocation2], %s642
          %644 = dma.done %s640, 512
        $region59: #{tpu_custom_call.1} parent=54 // pred_fallthru
          _
      $region55: #{tpu_custom_call.1} parent=5 // pred_fallthru
        _
    $region6: #{tpu_custom_call.1} parent=1 // loop_footer
      %s18 = sadd.s32 1, %s14
    $region7: #{tpu_custom_call.1} parent=1 // loop_footer_branch
      %13 = sbr.rel target = $region3
    $region8: #{tpu_custom_call.1} parent=1 // loop_exit
      _
    %645 = vsyncpa [#allocation3], 1
    %s646 = scalar_lea.sflag [#allocation3], 1
    %647 = vsyncpa %s646, 1

</llo_original>
